<compile_context>
chip_gen: v6e
topology: v6e:2x2x1
jax: 0.10.0
libtpu: 0.0.40
codegen_flags: <defaults>
</compile_context>

<pallas_src>
import functools

import jax
import jax.numpy as jnp
from jax.experimental import pallas as pl
from jax.experimental.pallas import tpu as pltpu


def _round_up(x, m):
    return ((x + m - 1) // m) * m


def protop_loss_kernel(output_ref, target_ref, min_dist_ref, cls_of_proto_ref,
                       fc_w_ref, partial_ref, acc_ref, l1_ref, *,
                       max_distance, cluster_w, sep_w, l1_w,
                       batch_size, mask_rows):
    i = pl.program_id(0)            # parallel (per-TensorCore) slice
    j = pl.program_id(1)            # sequential streaming step within the slice
    steps = pl.num_programs(1)

    # ---- init per-slice accumulators on the first streaming step ----
    @pl.when(j == 0)
    def _init():
        acc_ref[...] = jnp.zeros_like(acc_ref)
        l1_ref[0] = jnp.float32(0.0)

    # ---- L1 term: batch independent, computed exactly once, overlapped with
    #      the first streamed tile of slice 0 ----
    @pl.when(jnp.logical_and(i == 0, j == 0))
    def _l1():
        fc_w = fc_w_ref[...].astype(jnp.float32)              # (NC, P)
        n_cls, n_proto = fc_w.shape
        cls_iota = jax.lax.broadcasted_iota(jnp.int32, (n_cls, n_proto), 0)
        other_mask = cls_iota != cls_of_proto_ref[...]         # == 1 - onehot.T
        l1_ref[0] = jnp.sum(jnp.where(other_mask, jnp.abs(fc_w), 0.0))

    logits = output_ref[...].astype(jnp.float32)               # (TB, NC)
    target = target_ref[...]                                   # (TB, 1) i32
    min_d = min_dist_ref[...].astype(jnp.float32)              # (TB, P)
    cls_of_proto = cls_of_proto_ref[...]                       # (1, P)  i32

    tb, nc = logits.shape

    # ---- cross entropy per row (max-stabilised log-sum-exp) ----
    m = jnp.max(logits, axis=1, keepdims=True)
    lse = m + jnp.log(jnp.sum(jnp.exp(logits - m), axis=1, keepdims=True))
    class_ids = jax.lax.broadcasted_iota(jnp.int32, (tb, nc), 1)
    tgt_logit = jnp.sum(jnp.where(class_ids == target, logits, 0.0),
                        axis=1, keepdims=True)
    ce_per = lse - tgt_logit                                    # (TB, 1)

    # ---- cluster / separation: one VPU compare reused for both ----
    proto_for_class = cls_of_proto == target                    # (TB, P) bool
    inv_d = max_distance - min_d
    inv_to_target = jnp.max(jnp.where(proto_for_class, inv_d, 0.0),
                            axis=1, keepdims=True)
    inv_to_other = jnp.max(jnp.where(proto_for_class, 0.0, inv_d),
                           axis=1, keepdims=True)
    cluster_per = max_distance - inv_to_target
    sep_per = max_distance - inv_to_other

    # fuse the three reductions into one statically-weighted per-row partial
    partial_rows = ce_per + cluster_w * cluster_per + sep_w * sep_per

    if mask_rows:   # static python bool; only traced when padded rows exist
        row0 = (i * steps + j) * tb
        rows = row0 + jax.lax.broadcasted_iota(jnp.int32, (tb, 1), 0)
        partial_rows = jnp.where(rows < batch_size, partial_rows, 0.0)

    # single VMEM lane accumulator: one reduce + one vreg add per step,
    # no vector->SMEM scalar transition until the last step
    acc_ref[...] += jnp.sum(partial_rows)

    # ---- finalize this slice's contribution on its last streaming step ----
    @pl.when(j == steps - 1)
    def _finalize():
        inv_b = 1.0 / float(batch_size)
        val = acc_ref[...] * inv_b + l1_w * l1_ref[0]           # (1, 128)
        partial_ref[...] = jnp.broadcast_to(val, partial_ref.shape)


def protop_loss(output, target, min_distances, proto_onehot, fc_weight,
                prototype_shape,
                cluster_cost_weight=0.8,
                separation_cost_weight=0.08,
                l1_regularization_weight=0.0001,
                max_batch_tile=None):
    """Wrapper: static parameter plumbing + pallas_call. prototype_shape=(P,C,H,W)."""
    max_distance = float(prototype_shape[1] * prototype_shape[2] * prototype_shape[3])
    B, NC = output.shape
    P = min_distances.shape[1]

    # Static model-parameter plumbing (done once, outside the kernel):
    # class id of each prototype as a (1, P) int32 row (replaces the in-kernel
    # one-hot transpose + matmul with a VPU broadcast compare).
    class_of_proto = jnp.argmax(proto_onehot, axis=1).astype(jnp.int32).reshape(1, P)
    target_2d = target.astype(jnp.int32).reshape(B, 1)

    out_b = output.dtype.itemsize
    md_b = min_distances.dtype.itemsize
    fc_b = fc_weight.dtype.itemsize

    # sublane alignment: 8 rows (f32), 16 (bf16), 32 (int8) — inputs kept native
    align = 8 * max(1, 4 // max(1, min(out_b, md_b)))

    # ---- generation-aware VMEM budget (v5e/v6e 128 MiB, v7x 64 MiB/core) ----
    try:
        phys_vmem = int(pltpu.get_tpu_info().vmem_capacity_bytes)
    except Exception:
        phys_vmem = 64 * 1024 * 1024      # conservative fallback (v7x-sized)
    vmem_budget = max(32 * 1024 * 1024, int(phys_vmem * 0.75))

    row_bytes = NC * out_b + P * md_b + 4             # one streamed batch row
    resident_bytes = 2 * (P * 4 + NC * P * fc_b)      # residents (2 buffers each)
    slack = 2 * 1024 * 1024
    tb_cap = (vmem_budget - resident_bytes - slack) // (2 * row_bytes)
    tb_cap = max(align, min(int(tb_cap), 4096))
    if max_batch_tile is not None:                    # testing / manual override
        tb_cap = max(align, min(tb_cap, int(max_batch_tile)))

    # ---- balanced tile selection ----
    if B <= tb_cap:
        tb = B                                        # single full-batch block
        num_blocks = 1
    else:
        num_blocks = -(-B // tb_cap)
        tb = _round_up(-(-B // num_blocks), align)
        num_blocks = -(-B // tb)

    # ---- split streaming steps across TensorCores (v7x: 2 TCs) ----
    npar = 2 if num_blocks >= 2 else 1
    steps = -(-num_blocks // npar)
    mask_rows = (npar * steps * tb) != B
    grid = (npar, steps)
    last_block = num_blocks - 1

    def stream_map(i, j):
        # clamp so duplicate "padding" grid points re-read the last real block
        # (their rows are masked out inside the kernel)
        return (jnp.minimum(i * steps + j, last_block), 0)

    def resident_map(i, j):
        return (0, 0)

    kernel = functools.partial(
        protop_loss_kernel,
        max_distance=max_distance,
        cluster_w=float(cluster_cost_weight),
        sep_w=float(separation_cost_weight),
        l1_w=float(l1_regularization_weight),
        batch_size=B,
        mask_rows=mask_rows,
    )

    bytes_accessed = B * row_bytes + P * 4 + NC * P * fc_b + npar * 8 * 128 * 4
    cost = pl.CostEstimate(flops=int(B * (8 * NC + 6 * P) + 2 * NC * P),
                           transcendentals=int(B * (NC + 1)),
                           bytes_accessed=int(bytes_accessed))

    partials = pl.pallas_call(
        kernel,
        out_shape=jax.ShapeDtypeStruct((npar * 8, 128), jnp.float32),
        grid_spec=pltpu.PrefetchScalarGridSpec(
            num_scalar_prefetch=0,
            grid=grid,
            in_specs=[
                pl.BlockSpec((tb, NC), stream_map),      # logits, streamed
                pl.BlockSpec((tb, 1), stream_map),       # target, streamed
                pl.BlockSpec((tb, P), stream_map),       # min_distances, streamed
                pl.BlockSpec((1, P), resident_map),      # class_of_proto, resident
                pl.BlockSpec((NC, P), resident_map),     # fc_weight, resident
            ],
            out_specs=pl.BlockSpec((8, 128), lambda i, j: (i, 0)),
            scratch_shapes=[pltpu.VMEM((1, 128), jnp.float32),   # fused accumulator
                            pltpu.SMEM((1,), jnp.float32)],      # L1 (set once)
        ),
        compiler_params=pltpu.CompilerParams(
            dimension_semantics=("parallel", "arbitrary"),
            vmem_limit_bytes=int(vmem_budget)),
        cost_estimate=cost,
    )(output, target_2d, min_distances, class_of_proto, fc_weight)

    # per-core partials (already /B-scaled, slice 0 carries the L1 term)
    return jnp.sum(partials[0::8, 0])


def protop_loss_ref(output, target, min_distances, proto_onehot, fc_weight,
                    prototype_shape,
                    cluster_cost_weight=0.8,
                    separation_cost_weight=0.08,
                    l1_regularization_weight=0.0001):
    """Pure-JAX reference mirroring the PyTorch module."""
    max_distance = float(prototype_shape[1] * prototype_shape[2] * prototype_shape[3])
    B, NC = output.shape
    logz = jax.nn.log_softmax(output.astype(jnp.float32), axis=1)
    ce = -jnp.mean(logz[jnp.arange(B), target])
    proto_for_class = proto_onehot[:, target].T                        # (B, P)
    inv = (max_distance - min_distances.astype(jnp.float32))
    cluster = jnp.mean(max_distance - jnp.max(inv * proto_for_class, axis=1))
    sep = jnp.mean(max_distance - jnp.max(inv * (1 - proto_for_class), axis=1))
    l1 = jnp.sum(jnp.abs(fc_weight * (1 - proto_onehot.T)))
    return (ce + cluster_cost_weight * cluster + separation_cost_weight * sep
            + l1_regularization_weight * l1)


if __name__ == "__main__":
    key = jax.random.PRNGKey(0)
    k1, k2, k3, k4 = jax.random.split(key, 4)

    # small synthetic ProtoPNet-like config (B chosen so a forced tiny tile
    # exercises the 2-slice grid, partial-tile masking and duplicate-block clamp)
    B = 20                     # batch
    NC = 4                     # num classes
    protos_per_class = 2
    P = NC * protos_per_class  # num prototypes
    prototype_shape = (P, 32, 1, 1)   # (P, C, H, W) -> max_distance = 32

    proto_onehot = jnp.zeros((P, NC), jnp.float32).at[
        jnp.arange(P), jnp.arange(P) % NC].set(1.0)          # prototype -> class one-hot
    fc_weight = jax.random.normal(k1, (NC, P), jnp.float32)  # fully_connected.weight

    output = jax.random.normal(k2, (B, NC), jnp.float32)
    target = jax.random.randint(k3, (B,), 0, NC, jnp.int32)
    max_distance = prototype_shape[1] * prototype_shape[2] * prototype_shape[3]
    min_distances = jax.random.uniform(k4, (B, P), jnp.float32) * max_distance

    ref = protop_loss_ref(output, target, min_distances, proto_onehot, fc_weight,
                          prototype_shape)

    # 1) default path: VMEM-sized tile -> single block, grid (1, 1)
    loss = protop_loss(output, target, min_distances, proto_onehot, fc_weight,
                       prototype_shape)
    loss = jax.block_until_ready(loss)
    assert jnp.allclose(loss, ref, rtol=2e-5, atol=1e-4), (loss, ref)

    # 2) forced tiny tile: grid (2, 2) -> dual-slice accumulate, masked partial
    #    tile and clamped duplicate block all exercised.
    loss2 = protop_loss(output, target, min_distances, proto_onehot, fc_weight,
                        prototype_shape, max_batch_tile=8)
    loss2 = jax.block_until_ready(loss2)
    assert jnp.allclose(loss2, ref, rtol=2e-5, atol=1e-4), (loss2, ref)

    print("KERNEL_OK")
</pallas_src>

<mosaic_0001>
module attributes {stable_mosaic.version = 11 : i64} {
  func.func @protop_loss_kernel(%arg0: i32, %arg1: i32, %arg2: memref<20x4xf32, #tpu.memory_space<vmem>>, %arg3: memref<20x1xi32, #tpu.memory_space<vmem>>, %arg4: memref<20x8xf32, #tpu.memory_space<vmem>>, %arg5: memref<1x8xi32, #tpu.memory_space<vmem>>, %arg6: memref<4x8xf32, #tpu.memory_space<vmem>>, %arg7: memref<8x128xf32, #tpu.memory_space<vmem>>, %arg8: memref<1x128xf32, #tpu.memory_space<vmem>>, %arg9: memref<1xf32, #tpu.memory_space<smem>>) attributes {dimension_semantics = [#tpu.dimension_semantics<parallel>, #tpu.dimension_semantics<arbitrary>], iteration_bounds = array<i64: 1, 1>, scalar_prefetch = 0 : i64, scratch_operands = 2 : i64, tpu.core_type = #tpu.core_type<tc>, window_params = [{transform_indices = @transform_0, window_bounds = array<i64: 20, 4>}, {transform_indices = @transform_1, window_bounds = array<i64: 20, 1>}, {transform_indices = @transform_2, window_bounds = array<i64: 20, 8>}, {pipeline_mode = #tpu.pipeline_mode<synchronous>, transform_indices = @transform_3, window_bounds = array<i64: 1, 8>}, {pipeline_mode = #tpu.pipeline_mode<synchronous>, transform_indices = @transform_4, window_bounds = array<i64: 4, 8>}, {transform_indices = @transform_5, window_bounds = array<i64: 8, 128>}]} {
    %c0_i32 = arith.constant 0 : i32
    %0 = arith.cmpi eq, %arg1, %c0_i32 : i32
    %1 = arith.extui %0 : i1 to i32
    %c0_i32_0 = arith.constant 0 : i32
    %2 = arith.cmpi ne, %1, %c0_i32_0 : i32
    scf.if %2 {
      %cst_30 = arith.constant 0.000000e+00 : f32
      %63 = vector.broadcast %cst_30 : f32 to vector<1x128xf32>
      %c0_31 = arith.constant 0 : index
      %c0_32 = arith.constant 0 : index
      %64 = vector.load %arg8[%c0_31, %c0_32] : memref<1x128xf32, #tpu.memory_space<vmem>>, vector<1x128xf32>
      tpu.vector_store %arg8[%c0_31, %c0_32], %63 {strides = array<i32>} : memref<1x128xf32, #tpu.memory_space<vmem>>, vector<1x128xf32>,
      %cst_33 = arith.constant 0.000000e+00 : f32
      %c0_34 = arith.constant 0 : index
      %65 = memref.load %arg9[%c0_34] : memref<1xf32, #tpu.memory_space<smem>>
      memref.store %cst_33, %arg9[%c0_34] : memref<1xf32, #tpu.memory_space<smem>>
    } else {
    }
    %c0_i32_1 = arith.constant 0 : i32
    %3 = arith.cmpi eq, %arg0, %c0_i32_1 : i32
    %c0_i32_2 = arith.constant 0 : i32
    %4 = arith.cmpi eq, %arg1, %c0_i32_2 : i32
    %5 = arith.andi %3, %4 : i1
    %6 = arith.extui %5 : i1 to i32
    %c0_i32_3 = arith.constant 0 : i32
    %7 = arith.cmpi ne, %6, %c0_i32_3 : i32
    scf.if %7 {
      %c0_30 = arith.constant 0 : index
      %c0_31 = arith.constant 0 : index
      %63 = vector.load %arg6[%c0_30, %c0_31] : memref<4x8xf32, #tpu.memory_space<vmem>>, vector<4x8xf32>
      %64 = tpu.iota {dimensions = array<i32: 0>} : vector<4x8xi32>
      %c0_32 = arith.constant 0 : index
      %c0_33 = arith.constant 0 : index
      %65 = vector.load %arg5[%c0_32, %c0_33] : memref<1x8xi32, #tpu.memory_space<vmem>>, vector<1x8xi32>
      %66 = vector.broadcast %65 : vector<1x8xi32> to vector<4x8xi32>
      %67 = arith.cmpi ne, %64, %66 : vector<4x8xi32>
      %68 = math.absf %63 : vector<4x8xf32>
      %cst_34 = arith.constant 0.000000e+00 : f32
      %69 = vector.broadcast %cst_34 : f32 to vector<4x8xf32>
      %70 = arith.select %67, %68, %69 : vector<4x8xi1>, vector<4x8xf32>
      %71 = vector.shape_cast %70 : vector<4x8xf32> to vector<1x4x8xf32>
      %cst_35 = arith.constant dense<0.000000e+00> : vector<1xf32>
      %72 = vector.multi_reduction <add>, %71, %cst_35 [1, 2] : vector<1x4x8xf32> to vector<1xf32>
      %73 = vector.shape_cast %72 : vector<1xf32> to vector<1x1x1xf32>
      %74 = vector.extract %73[0, 0, 0] : f32 from vector<1x1x1xf32>
      %c0_36 = arith.constant 0 : index
      %75 = memref.load %arg9[%c0_36] : memref<1xf32, #tpu.memory_space<smem>>
      memref.store %74, %arg9[%c0_36] : memref<1xf32, #tpu.memory_space<smem>>
    } else {
    }
    %c0 = arith.constant 0 : index
    %c0_4 = arith.constant 0 : index
    %8 = vector.load %arg2[%c0, %c0_4] : memref<20x4xf32, #tpu.memory_space<vmem>>, vector<20x4xf32>
    %c0_5 = arith.constant 0 : index
    %c0_6 = arith.constant 0 : index
    %9 = vector.load %arg3[%c0_5, %c0_6] : memref<20x1xi32, #tpu.memory_space<vmem>>, vector<20x1xi32>
    %c0_7 = arith.constant 0 : index
    %c0_8 = arith.constant 0 : index
    %10 = vector.load %arg4[%c0_7, %c0_8] : memref<20x8xf32, #tpu.memory_space<vmem>>, vector<20x8xf32>
    %c0_9 = arith.constant 0 : index
    %c0_10 = arith.constant 0 : index
    %11 = vector.load %arg5[%c0_9, %c0_10] : memref<1x8xi32, #tpu.memory_space<vmem>>, vector<1x8xi32>
    %cst = arith.constant dense<0xFF800000> : vector<20xf32>
    %12 = vector.multi_reduction <maximumf>, %8, %cst [1] : vector<20x4xf32> to vector<20xf32>
    %13 = vector.shape_cast %12 : vector<20xf32> to vector<20x1xf32>
    %14 = vector.broadcast %13 : vector<20x1xf32> to vector<20x4xf32>
    %15 = arith.subf %8, %14 : vector<20x4xf32>
    %16 = math.exp %15 : vector<20x4xf32>
    %cst_11 = arith.constant dense<0.000000e+00> : vector<20xf32>
    %17 = vector.multi_reduction <add>, %16, %cst_11 [1] : vector<20x4xf32> to vector<20xf32>
    %18 = vector.shape_cast %17 : vector<20xf32> to vector<20x1xf32>
    %19 = math.log %18 : vector<20x1xf32>
    %20 = arith.addf %13, %19 : vector<20x1xf32>
    %21 = tpu.iota {dimensions = array<i32: 1>} : vector<20x4xi32>
    %22 = vector.broadcast %9 : vector<20x1xi32> to vector<20x4xi32>
    %23 = arith.cmpi eq, %21, %22 : vector<20x4xi32>
    %cst_12 = arith.constant 0.000000e+00 : f32
    %24 = vector.broadcast %cst_12 : f32 to vector<20x4xf32>
    %25 = arith.select %23, %8, %24 : vector<20x4xi1>, vector<20x4xf32>
    %cst_13 = arith.constant dense<0.000000e+00> : vector<20xf32>
    %26 = vector.multi_reduction <add>, %25, %cst_13 [1] : vector<20x4xf32> to vector<20xf32>
    %27 = vector.shape_cast %26 : vector<20xf32> to vector<20x1xf32>
    %28 = arith.subf %20, %27 : vector<20x1xf32>
    %29 = vector.broadcast %11 : vector<1x8xi32> to vector<20x8xi32>
    %30 = vector.broadcast %9 : vector<20x1xi32> to vector<20x8xi32>
    %31 = arith.cmpi eq, %29, %30 : vector<20x8xi32>
    %cst_14 = arith.constant 3.200000e+01 : f32
    %32 = vector.broadcast %cst_14 : f32 to vector<20x8xf32>
    %33 = arith.subf %32, %10 : vector<20x8xf32>
    %cst_15 = arith.constant 0.000000e+00 : f32
    %34 = vector.broadcast %cst_15 : f32 to vector<20x8xf32>
    %35 = arith.select %31, %33, %34 : vector<20x8xi1>, vector<20x8xf32>
    %cst_16 = arith.constant dense<0xFF800000> : vector<20xf32>
    %36 = vector.multi_reduction <maximumf>, %35, %cst_16 [1] : vector<20x8xf32> to vector<20xf32>
    %37 = vector.shape_cast %36 : vector<20xf32> to vector<20x1xf32>
    %cst_17 = arith.constant 0.000000e+00 : f32
    %38 = vector.broadcast %cst_17 : f32 to vector<20x8xf32>
    %39 = arith.select %31, %38, %33 : vector<20x8xi1>, vector<20x8xf32>
    %cst_18 = arith.constant dense<0xFF800000> : vector<20xf32>
    %40 = vector.multi_reduction <maximumf>, %39, %cst_18 [1] : vector<20x8xf32> to vector<20xf32>
    %41 = vector.shape_cast %40 : vector<20xf32> to vector<20x1xf32>
    %cst_19 = arith.constant 3.200000e+01 : f32
    %42 = vector.broadcast %cst_19 : f32 to vector<20x1xf32>
    %43 = arith.subf %42, %37 : vector<20x1xf32>
    %cst_20 = arith.constant 3.200000e+01 : f32
    %44 = vector.broadcast %cst_20 : f32 to vector<20x1xf32>
    %45 = arith.subf %44, %41 : vector<20x1xf32>
    %cst_21 = arith.constant 8.000000e-01 : f32
    %46 = vector.broadcast %cst_21 : f32 to vector<20x1xf32>
    %47 = arith.mulf %46, %43 : vector<20x1xf32>
    %48 = arith.addf %28, %47 : vector<20x1xf32>
    %cst_22 = arith.constant 8.000000e-02 : f32
    %49 = vector.broadcast %cst_22 : f32 to vector<20x1xf32>
    %50 = arith.mulf %49, %45 : vector<20x1xf32>
    %51 = arith.addf %48, %50 : vector<20x1xf32>
    %c0_23 = arith.constant 0 : index
    %c0_24 = arith.constant 0 : index
    %52 = vector.load %arg8[%c0_23, %c0_24] : memref<1x128xf32, #tpu.memory_space<vmem>>, vector<1x128xf32>
    %53 = vector.shape_cast %51 : vector<20x1xf32> to vector<1x20x1xf32>
    %cst_25 = arith.constant dense<0.000000e+00> : vector<1xf32>
    %54 = vector.multi_reduction <add>, %53, %cst_25 [1, 2] : vector<1x20x1xf32> to vector<1xf32>
    %55 = vector.shape_cast %54 : vector<1xf32> to vector<1x1x1xf32>
    %56 = vector.extract %55[0, 0, 0] : f32 from vector<1x1x1xf32>
    %57 = vector.broadcast %56 : f32 to vector<1x128xf32>
    %58 = arith.addf %52, %57 : vector<1x128xf32>
    %c0_26 = arith.constant 0 : index
    %c0_27 = arith.constant 0 : index
    %59 = vector.load %arg8[%c0_26, %c0_27] : memref<1x128xf32, #tpu.memory_space<vmem>>, vector<1x128xf32>
    tpu.vector_store %arg8[%c0_26, %c0_27], %58 {strides = array<i32>} : memref<1x128xf32, #tpu.memory_space<vmem>>, vector<1x128xf32>,
    %c0_i32_28 = arith.constant 0 : i32
    %60 = arith.cmpi eq, %arg1, %c0_i32_28 : i32
    %61 = arith.extui %60 : i1 to i32
    %c0_i32_29 = arith.constant 0 : i32
    %62 = arith.cmpi ne, %61, %c0_i32_29 : i32
    scf.if %62 {
      %c0_30 = arith.constant 0 : index
      %c0_31 = arith.constant 0 : index
      %63 = vector.load %arg8[%c0_30, %c0_31] : memref<1x128xf32, #tpu.memory_space<vmem>>, vector<1x128xf32>
      %cst_32 = arith.constant 5.000000e-02 : f32
      %64 = vector.broadcast %cst_32 : f32 to vector<1x128xf32>
      %65 = arith.mulf %63, %64 : vector<1x128xf32>
      %c0_33 = arith.constant 0 : index
      %66 = memref.load %arg9[%c0_33] : memref<1xf32, #tpu.memory_space<smem>>
      %cst_34 = arith.constant 9.99999974E-5 : f32
      %67 = arith.mulf %cst_34, %66 : f32
      %68 = vector.broadcast %67 : f32 to vector<1x128xf32>
      %69 = arith.addf %65, %68 : vector<1x128xf32>
      %70 = vector.shape_cast %69 : vector<1x128xf32> to vector<1x128xf32>
      %71 = vector.broadcast %70 : vector<1x128xf32> to vector<8x128xf32>
      %c0_35 = arith.constant 0 : index
      %c0_36 = arith.constant 0 : index
      %72 = vector.load %arg7[%c0_35, %c0_36] : memref<8x128xf32, #tpu.memory_space<vmem>>, vector<8x128xf32>
      tpu.vector_store %arg7[%c0_35, %c0_36], %71 {strides = array<i32>} : memref<8x128xf32, #tpu.memory_space<vmem>>, vector<8x128xf32>,
    } else {
    }
    return
  }
  func.func @transform_0(%arg0: i32, %arg1: i32) -> (i32, i32) {
    %c1_i32 = arith.constant 1 : i32
    %0 = arith.muli %arg0, %c1_i32 : i32
    %1 = arith.addi %0, %arg1 : i32
    %c0_i32 = arith.constant 0 : i32
    %2 = arith.minsi %1, %c0_i32 : i32
    %c0_i32_0 = arith.constant 0 : i32
    %c0_i32_1 = arith.constant 0 : i32
    return %2, %c0_i32_0 : i32, i32
  }
  func.func @transform_1(%arg0: i32, %arg1: i32) -> (i32, i32) {
    %c1_i32 = arith.constant 1 : i32
    %0 = arith.muli %arg0, %c1_i32 : i32
    %1 = arith.addi %0, %arg1 : i32
    %c0_i32 = arith.constant 0 : i32
    %2 = arith.minsi %1, %c0_i32 : i32
    %c0_i32_0 = arith.constant 0 : i32
    %c0_i32_1 = arith.constant 0 : i32
    return %2, %c0_i32_0 : i32, i32
  }
  func.func @transform_2(%arg0: i32, %arg1: i32) -> (i32, i32) {
    %c1_i32 = arith.constant 1 : i32
    %0 = arith.muli %arg0, %c1_i32 : i32
    %1 = arith.addi %0, %arg1 : i32
    %c0_i32 = arith.constant 0 : i32
    %2 = arith.minsi %1, %c0_i32 : i32
    %c0_i32_0 = arith.constant 0 : i32
    %c0_i32_1 = arith.constant 0 : i32
    return %2, %c0_i32_0 : i32, i32
  }
  func.func @transform_3(%arg0: i32, %arg1: i32) -> (i32, i32) {
    %c0_i32 = arith.constant 0 : i32
    %c0_i32_0 = arith.constant 0 : i32
    %c0_i32_1 = arith.constant 0 : i32
    return %c0_i32, %c0_i32_0 : i32, i32
  }
  func.func @transform_4(%arg0: i32, %arg1: i32) -> (i32, i32) {
    %c0_i32 = arith.constant 0 : i32
    %c0_i32_0 = arith.constant 0 : i32
    %c0_i32_1 = arith.constant 0 : i32
    return %c0_i32, %c0_i32_0 : i32, i32
  }
  func.func @transform_5(%arg0: i32, %arg1: i32) -> (i32, i32) {
    %c0_i32 = arith.constant 0 : i32
    %c0_i32_0 = arith.constant 0 : i32
    return %arg0, %c0_i32 : i32, i32
  }
}

</mosaic_0001>

<llo_original>
// kernel: tpu_custom_call.1
$region0: #{tpu_custom_call.1}
  #allocation0 [shape = 'u32[]', space=smem, size = 0x4, offset = 0x4, fixed_abs, tag = 'smem constant byte address 0x4 - core index']
  #allocation1 [shape = 'u32[144,128]{1,0:T(1,128)}', space=vmem, size = 0x12000, scoped, tag = 'internal scratch']
  #allocation2 [shape = 'f32[1,128]{1,0:T(1,128)}', space=vmem, size = 0x200, scoped, tag = 'scratch operand']
  #allocation3 [shape = 'f32[1]{0:T(128)}', space=smem, size = 0x200, scoped, tag = 'scratch operand']
  %s0 = inlined_call_operand.vmem [shape: f32[20,4], index: 0, kind: input, shape index: {}]
  %s1 = inlined_call_operand.vmem [shape: s32[20,1], index: 1, kind: input, shape index: {}]
  %s2 = inlined_call_operand.vmem [shape: f32[20,8], index: 2, kind: input, shape index: {}]
  %s3 = inlined_call_operand.vmem [shape: s32[1,8], index: 3, kind: input, shape index: {}]
  %s4 = inlined_call_operand.vmem [shape: f32[4,8], index: 4, kind: input, shape index: {}]
  %s5 = inlined_call_operand.hbm [shape: f32[8,128], index: 5, kind: output, shape index: {}]
  %s6 = sld [smem:[#allocation0]]
  $region42: #{tpu_custom_call.1} parent=0
    _
  %s8 = ssub.s32 1, %s6
  %s9 = scalar_select 0, %s8, %s6
  $region1: #{tpu_custom_call.1} parent=0
    #allocation4 [shape = 'u8[4096]{0}', space=vmem, size = 0x1000, scoped, tag = 'output window, operand 0, single buffered']
    #allocation5 [shape = 's32[1]{0}', space=sflag, size = 0x4, scoped, tag = 'scoped memory for tpu_custom_call.1']
    %10 = vsyncpa [#allocation5], 0
    // Predicated region
    $region2: #{tpu_custom_call.1} parent=1 // pred_check
      _
    $region3: #{tpu_custom_call.1} parent=1 // pred_check_branch
      %12 = sbr.rel (0) target = $region5
    $region4: #{tpu_custom_call.1} parent=1 // pred_region
      %s13 = sadd.s32 0, 0
      %p14 = scmp.lt.s32.totalorder %s13, 0
      %s15 = scalar_select %p14, %s13, 0
      %s16 = smul.u32 3, %s15
      %p17 = scmp.lt.s32.totalorder %s16, 2
      %s18 = scalar_select %p17, %s16, 2
      %s19 = smul.addr %s18, 8
      %s20 = scalar_lea.vmem %s0, %s19
      %s21 = sadd.s32 0, 0
      %p22 = scmp.lt.s32.totalorder %s21, 0
      %s23 = scalar_select %p22, %s21, 0
      %s24 = smul.u32 3, %s23
    $region5: #{tpu_custom_call.1} parent=1 // pred_fallthru
      _
    // Predicated region
    $region6: #{tpu_custom_call.1} parent=1 // pred_check
      _
    $region7: #{tpu_custom_call.1} parent=1 // pred_check_branch
      %26 = sbr.rel (0) target = $region9
    $region8: #{tpu_custom_call.1} parent=1 // pred_region
      %s27 = sadd.s32 0, 0
      %p28 = scmp.lt.s32.totalorder %s27, 0
      %s29 = scalar_select %p28, %s27, 0
      %s30 = smul.u32 3, %s29
      %p31 = scmp.lt.s32.totalorder %s30, 2
      %s32 = scalar_select %p31, %s30, 2
      %s33 = smul.addr %s32, 8
      %s34 = scalar_lea.vmem %s1, %s33
      %s35 = sadd.s32 0, 0
      %p36 = scmp.lt.s32.totalorder %s35, 0
      %s37 = scalar_select %p36, %s35, 0
      %s38 = smul.u32 3, %s37
    $region9: #{tpu_custom_call.1} parent=1 // pred_fallthru
      _
    // Predicated region
    $region10: #{tpu_custom_call.1} parent=1 // pred_check
      _
    $region11: #{tpu_custom_call.1} parent=1 // pred_check_branch
      %40 = sbr.rel (0) target = $region13
    $region12: #{tpu_custom_call.1} parent=1 // pred_region
      %s41 = sadd.s32 0, 0
      %p42 = scmp.lt.s32.totalorder %s41, 0
      %s43 = scalar_select %p42, %s41, 0
      %s44 = smul.u32 3, %s43
      %p45 = scmp.lt.s32.totalorder %s44, 2
      %s46 = scalar_select %p45, %s44, 2
      %s47 = smul.addr %s46, 8
      %s48 = scalar_lea.vmem %s2, %s47
      %s49 = sadd.s32 0, 0
      %p50 = scmp.lt.s32.totalorder %s49, 0
      %s51 = scalar_select %p50, %s49, 0
      %s52 = smul.u32 3, %s51
    $region13: #{tpu_custom_call.1} parent=1 // pred_fallthru
      _
    // Predicated region
    $region14: #{tpu_custom_call.1} parent=1 // pred_check
      _
    $region15: #{tpu_custom_call.1} parent=1 // pred_check_branch
      %54 = sbr.rel (0) target = $region17
    $region16: #{tpu_custom_call.1} parent=1 // pred_region
      _
    $region17: #{tpu_custom_call.1} parent=1 // pred_fallthru
      _
    // Predicated region
    $region18: #{tpu_custom_call.1} parent=1 // pred_check
      _
    $region19: #{tpu_custom_call.1} parent=1 // pred_check_branch
      %56 = sbr.rel (0) target = $region21
    $region20: #{tpu_custom_call.1} parent=1 // pred_region
      _
    $region21: #{tpu_custom_call.1} parent=1 // pred_fallthru
      _
    %s57 = sadd.s32 0, 0
    %p58 = scmp.lt.s32.totalorder %s57, 0
    %s59 = scalar_select %p58, %s57, 0
    %s60 = smul.u32 3, %s59
    %p61 = scmp.lt.s32.totalorder %s60, 2
    %s62 = scalar_select %p61, %s60, 2
    %s63 = smul.addr %s62, 8
    %s64 = scalar_lea.vmem %s0, %s63
    %s65 = sadd.s32 0, 0
    %p66 = scmp.lt.s32.totalorder %s65, 0
    %s67 = scalar_select %p66, %s65, 0
    %s68 = smul.u32 3, %s67
    %p69 = scmp.lt.s32.totalorder %s68, 2
    %s70 = scalar_select %p69, %s68, 2
    %s71 = smul.addr %s70, 8
    %s72 = scalar_lea.vmem %s1, %s71
    %s73 = sadd.s32 0, 0
    %p74 = scmp.lt.s32.totalorder %s73, 0
    %s75 = scalar_select %p74, %s73, 0
    %s76 = smul.u32 3, %s75
    %p77 = scmp.lt.s32.totalorder %s76, 2
    %s78 = scalar_select %p77, %s76, 2
    %s79 = smul.addr %s78, 8
    %s80 = scalar_lea.vmem %s2, %s79
    %s81 = sadd.s32 0, 0
    %p82 = scmp.lt.s32.totalorder %s81, 0
    %s83 = scalar_select %p82, %s81, 0
    %s84 = smul.u32 3, %s83
    %p85 = scmp.lt.s32.totalorder %s84, 2
    %s86 = scalar_select %p85, %s84, 2
    %s87 = smul.addr %s86, 8
    %s88 = scalar_lea.vmem %s0, %s87
    %s89 = sadd.s32 0, 0
    %p90 = scmp.lt.s32.totalorder %s89, 0
    %s91 = scalar_select %p90, %s89, 0
    %s92 = smul.u32 3, %s91
    %s93 = sadd.s32 0, 0
    %p94 = scmp.lt.s32.totalorder %s93, 0
    %s95 = scalar_select %p94, %s93, 0
    %s96 = smul.u32 3, %s95
    %p97 = scmp.lt.s32.totalorder %s96, 2
    %s98 = scalar_select %p97, %s96, 2
    %s99 = smul.addr %s98, 8
    %s100 = scalar_lea.vmem %s1, %s99
    %s101 = sadd.s32 0, 0
    %p102 = scmp.lt.s32.totalorder %s101, 0
    %s103 = scalar_select %p102, %s101, 0
    %s104 = smul.u32 3, %s103
    %s105 = sadd.s32 0, 0
    %p106 = scmp.lt.s32.totalorder %s105, 0
    %s107 = scalar_select %p106, %s105, 0
    %s108 = smul.u32 3, %s107
    %p109 = scmp.lt.s32.totalorder %s108, 2
    %s110 = scalar_select %p109, %s108, 2
    %s111 = smul.addr %s110, 8
    %s112 = scalar_lea.vmem %s2, %s111
    %s113 = sadd.s32 0, 0
    %p114 = scmp.lt.s32.totalorder %s113, 0
    %s115 = scalar_select %p114, %s113, 0
    %s116 = smul.u32 3, %s115
    %p117 = scmp.eq.s32.totalorder 0, 0
    // Predicated region
    $region22: #{tpu_custom_call.1} parent=1 // pred_check
      %p118 = pneg %p117
    $region23: #{tpu_custom_call.1} parent=1 // pred_check_branch
      %120 = sbr.rel (%p118) target = $region25
    $region24: #{tpu_custom_call.1} parent=1 // pred_region
      %121 = vst [vmem:[#allocation2] sm:$0x1] 0.0
      %s122 = scalar_lea.smem [#allocation3], 0
      %123 = sst [smem:[%s122]] 0.0
    $region25: #{tpu_custom_call.1} parent=1 // pred_fallthru
      _
    %p124 = scmp.eq.s32.totalorder 0, 0
    %p125 = pnand %p124, %p117
    %p126 = pneg %p125
    // Predicated region
    $region26: #{tpu_custom_call.1} parent=1 // pred_check
      _
    $region27: #{tpu_custom_call.1} parent=1 // pred_check_branch
      %128 = sbr.rel (%p125) target = $region29
    $region28: #{tpu_custom_call.1} parent=1 // pred_region
      %v129 = vld [vmem:[%s4] sm:$0xf]
      %v130 = vlaneseq
      %v131 = vshrl.u32 %v130, 7
      %v132 = vld [vmem:[%s3] sm:$0x1]
      %v133 = vlaneseq
      %v134 = vshrl.u32 %v133, 7
      %v135 = vsub.s32 0, %v134
      %v136 = vrot.slane %v132, %v135
      %vm137 = vcmp.ne.s32.totalorder %v131, %v136
      %v138 = vand.u32 2147483647, %v129
      %v139 = vsel %vm137, %v138, 0.0
      %vm140 = vcmask 60416
      %v141 = vsel %vm140, %v139, 0.0
      %142 = vadd.xlane.f32.xlu0 %v141
      %v143 = vpop.xlane.xlu0 %142
      %v144 = vrot.slane %v143, 4
      %v145 = vadd.f32 %v143, %v144
      %v146 = vrot.slane %v145, 2
      %v147 = vadd.f32 %v145, %v146
      %v148 = vrot.slane %v147, 1
      %v149 = vadd.f32 %v147, %v148
      %s150 = vtos %v149
      %s151 = scalar_lea.smem [#allocation3], 0
      %152 = sst [smem:[%s151]] %s150
    $region29: #{tpu_custom_call.1} parent=1 // pred_fallthru
      _
    %v153 = vld [vmem:[%s88] sm:$0xff]
    %v154 = vld [vmem:[%s88 + $0x8] sm:$0xff]
    %v155 = vld [vmem:[%s88 + $0x10] sm:$0xf]
    %v156 = vld [vmem:[%s100] sm:$0xff]
    %v157 = vld [vmem:[%s100 + $0x8] sm:$0xff]
    %v158 = vld [vmem:[%s100 + $0x10] sm:$0xf]
    %v159 = vld [vmem:[%s112] sm:$0xff]
    %v160 = vld [vmem:[%s112 + $0x8] sm:$0xff]
    %v161 = vld [vmem:[%s112 + $0x10] sm:$0xf]
    %v162 = vld [vmem:[%s3] sm:$0x1]
    %vm163 = vcmask 31744
    %v164 = vsel %vm163, %v153, -inf
    %165 = vmax.xlane.f32.xlu0 %v164
    %v166 = vpop.xlane.xlu0 %165
    %v167 = vsel %vm163, %v154, -inf
    %168 = vmax.xlane.f32.xlu0 %v167
    %v169 = vpop.xlane.xlu0 %168
    %vm170 = vcmask 27648
    %v171 = vsel %vm170, %v155, -inf
    %172 = vmax.xlane.f32.xlu0 %v171
    %v173 = vpop.xlane.xlu0 %172
    %v174 = vsub.f32 %v153, %v166
    %v175 = vsub.f32 %v154, %v169
    %v176 = vsub.f32 %v155, %v173
    %v177 = vmul.f32 %v174, 1.442695
    %v178 = vpow.pop %v177
    %v179 = vmul.f32 %v175, 1.442695
    %v180 = vpow.pop %v179
    %v181 = vmul.f32 %v176, 1.442695
    %v182 = vpow.pop %v181
    %v183 = vsel %vm163, %v178, 0.0
    %184 = vadd.xlane.f32.xlu0 %v183
    %v185 = vpop.xlane.xlu0 %184
    %v186 = vsel %vm163, %v180, 0.0
    %187 = vadd.xlane.f32.xlu0 %v186
    %v188 = vpop.xlane.xlu0 %187
    %v189 = vsel %vm170, %v182, 0.0
    %190 = vadd.xlane.f32.xlu0 %v189
    %v191 = vpop.xlane.xlu0 %190
    %v192 = vlog2.pop %v185
    %v193 = vmul.f32 %v192, 0.6931472
    %v194 = vlog2.pop %v188
    %v195 = vmul.f32 %v194, 0.6931472
    %v196 = vlog2.pop %v191
    %v197 = vmul.f32 %v196, 0.6931472
    %v198 = vadd.f32 %v166, %v193
    %v199 = vadd.f32 %v169, %v195
    %v200 = vadd.f32 %v173, %v197
    %v201 = vlaneseq
    %v202 = vand.u32 %v201, 127
    %203 = vset.pattern.permute.xlu0 0
    %204 = vperm.xlu0 %203, %v156
    %v205 = vpop.permute.xlu0 %204
    %206 = vset.pattern.permute.xlu0 0
    %207 = vperm.xlu0 %206, %v157
    %v208 = vpop.permute.xlu0 %207
    %209 = vset.pattern.permute.xlu0 0
    %210 = vperm.xlu0 %209, %v158
    %v211 = vpop.permute.xlu0 %210
    %vm212 = vcmp.eq.s32.totalorder %v202, %v205
    %vm213 = vcmp.eq.s32.totalorder %v202, %v208
    %vm214 = vcmp.eq.s32.totalorder %v202, %v211
    %v215 = vsel %vm212, %v153, 0.0
    %v216 = vsel %vm213, %v154, 0.0
    %v217 = vsel %vm214, %v155, 0.0
    %v218 = vsel %vm163, %v215, 0.0
    %219 = vadd.xlane.f32.xlu0 %v218
    %v220 = vpop.xlane.xlu0 %219
    %v221 = vsel %vm163, %v216, 0.0
    %222 = vadd.xlane.f32.xlu0 %v221
    %v223 = vpop.xlane.xlu0 %222
    %v224 = vsel %vm170, %v217, 0.0
    %225 = vadd.xlane.f32.xlu0 %v224
    %v226 = vpop.xlane.xlu0 %225
    %v227 = vsub.f32 %v198, %v220
    %v228 = vsub.f32 %v199, %v223
    %v229 = vsub.f32 %v200, %v226
    %v230 = vlaneseq
    %v231 = vshrl.u32 %v230, 7
    %v232 = vsub.s32 0, %v231
    %v233 = vrot.slane %v162, %v232
    %vm234 = vcmp.eq.s32.totalorder %v233, %v205
    %vm235 = vcmp.eq.s32.totalorder %v233, %v208
    %vm236 = vcmp.eq.s32.totalorder %v233, %v211
    %v237 = vsub.f32 32.0, %v159
    %v238 = vsub.f32 32.0, %v160
    %v239 = vsub.f32 32.0, %v161
    %v240 = vsel %vm234, %v237, 0.0
    %v241 = vsel %vm235, %v238, 0.0
    %v242 = vsel %vm236, %v239, 0.0
    %vm243 = vcmask 64512
    %v244 = vsel %vm243, %v240, -inf
    %245 = vmax.xlane.f32.xlu0 %v244
    %v246 = vpop.xlane.xlu0 %245
    %v247 = vsel %vm243, %v241, -inf
    %248 = vmax.xlane.f32.xlu0 %v247
    %v249 = vpop.xlane.xlu0 %248
    %vm250 = vcmask 60416
    %v251 = vsel %vm250, %v242, -inf
    %252 = vmax.xlane.f32.xlu0 %v251
    %v253 = vpop.xlane.xlu0 %252
    %v254 = vsel %vm234, 0.0, %v237
    %v255 = vsel %vm235, 0.0, %v238
    %v256 = vsel %vm236, 0.0, %v239
    %v257 = vsel %vm243, %v254, -inf
    %258 = vmax.xlane.f32.xlu0 %v257
    %v259 = vpop.xlane.xlu0 %258
    %v260 = vsel %vm243, %v255, -inf
    %261 = vmax.xlane.f32.xlu0 %v260
    %v262 = vpop.xlane.xlu0 %261
    %v263 = vsel %vm250, %v256, -inf
    %264 = vmax.xlane.f32.xlu0 %v263
    %v265 = vpop.xlane.xlu0 %264
    %v266 = vsub.f32 32.0, %v246
    %v267 = vsub.f32 32.0, %v249
    %v268 = vsub.f32 32.0, %v253
    %v269 = vsub.f32 32.0, %v259
    %v270 = vsub.f32 32.0, %v262
    %v271 = vsub.f32 32.0, %v265
    %v272 = vmul.f32 %v266, 0.8
    %v273 = vmul.f32 %v267, 0.8
    %v274 = vmul.f32 %v268, 0.8
    %v275 = vadd.f32 %v227, %v272
    %v276 = vadd.f32 %v228, %v273
    %v277 = vadd.f32 %v229, %v274
    %v278 = vmul.f32 %v269, 0.08
    %v279 = vmul.f32 %v270, 0.08
    %v280 = vmul.f32 %v271, 0.08
    %v281 = vadd.f32 %v275, %v278
    %v282 = vadd.f32 %v276, %v279
    %v283 = vadd.f32 %v277, %v280
    %v284 = vld [vmem:[#allocation2] sm:$0x1]
    %vm285 = vcmask 7168
    %v286 = vsel %vm285, %v281, 0.0
    %v287 = vsel %vm285, %v282, 0.0
    %v288 = vadd.f32 %v286, %v287
    %vm289 = vcmask 3072
    %v290 = vsel %vm289, %v283, 0.0
    %v291 = vadd.f32 %v288, %v290
    %292 = vadd.xlane.f32.xlu0 %v291
    %v293 = vpop.xlane.xlu0 %292
    %v294 = vrot.slane %v293, 4
    %v295 = vadd.f32 %v293, %v294
    %v296 = vrot.slane %v295, 2
    %v297 = vadd.f32 %v295, %v296
    %v298 = vrot.slane %v297, 1
    %v299 = vadd.f32 %v297, %v298
    %s300 = vtos %v299
    %v301 = vstv %s300
    %v302 = vadd.f32 %v284, %v301
    %303 = vst [vmem:[#allocation2] sm:$0x1] %v302
    // Predicated region
    $region30: #{tpu_custom_call.1} parent=1 // pred_check
      %p304 = pneg %p117
    $region31: #{tpu_custom_call.1} parent=1 // pred_check_branch
      %306 = sbr.rel (%p304) target = $region33
    $region32: #{tpu_custom_call.1} parent=1 // pred_region
      %v307 = vld [vmem:[#allocation2] sm:$0x1]
      %v308 = vmul.f32 %v307, 0.05
      %s309 = sld [smem:[#allocation3]]
      %s310 = smul.f32 %s309, 0.0001
      %v311 = vstv %s310
      %v312 = vadd.f32 %v308, %v311
      %v314 = vlaneseq
      %v315 = vshrl.u32 %v314, 7
      %v316 = vsub.s32 0, %v315
      %v317 = vrot.slane %v312, %v316
      %319 = vst [vmem:[#allocation4] sm:$0xff] %v317
    $region33: #{tpu_custom_call.1} parent=1 // pred_fallthru
      _
    // Predicated region
    $region34: #{tpu_custom_call.1} parent=1 // pred_check
      _
    $region35: #{tpu_custom_call.1} parent=1 // pred_check_branch
      %321 = sbr.rel (0) target = $region37
    $region36: #{tpu_custom_call.1} parent=1 // pred_region
      %s323 = ssub.s32 128, 128
      %324 = vsyncadd [#allocation5], %s323
      %s326 = sshll.u32 [#allocation4], 4
      %s327 = int_to_ptr.vmem [resolvable:$true] %s326
      %329 = dma.vmem_to_hbm [thread:$0]  %s327, 128, %s5, [#allocation5]
    $region37: #{tpu_custom_call.1} parent=1 // pred_fallthru
      _
    // Predicated region
    $region38: #{tpu_custom_call.1} parent=1 // pred_check
      _
    $region39: #{tpu_custom_call.1} parent=1 // pred_check_branch
      %331 = sbr.rel (0) target = $region41
    $region40: #{tpu_custom_call.1} parent=1 // pred_region
      %332 = dma.done [#allocation5], 128
    $region41: #{tpu_custom_call.1} parent=1 // pred_fallthru
      _
    %333 = vsyncpa [#allocation5], 1

</llo_original>
